<compile_context>
chip_gen: v6e
topology: v6e:2x2x1
jax: 0.10.0
libtpu: 0.0.40
codegen_flags: <defaults>
</compile_context>

<pallas_src>
import functools

import jax
import jax.numpy as jnp
from jax import lax
from jax.experimental import pallas as pl
from jax.experimental.pallas import tpu as pltpu

_MAX_NLOG = 18.420680743952367  # -log(1e-8): tail clamp matching the eps'd reference


def _ova_loss_kernel(x_ref, lab_ref, o_ref, *, n_rows, n_cols):
    # x_ref:   (bb, 2*C) f32   [:, :C] = channel-0 logits, [:, C:] = channel-1 logits
    # lab_ref: (bb, 1)    int32 labels
    # o_ref:   (1, 8, 128) f32 resident per-core accumulator (scalar broadcast)
    c = pl.program_id(0)   # parallel (core) axis
    i = pl.program_id(1)   # sequential accumulation axis

    @pl.when(i == 0)
    def _():
        o_ref[...] = jnp.zeros_like(o_ref)

    C = n_cols
    x0 = x_ref[:, :C]      # (bb, C)
    x1 = x_ref[:, C:]      # (bb, C)

    # 2-way softmax in closed form:
    #   -log(p1) = softplus(x0 - x1);  -log(p0) = softplus(x1 - x0) = softplus(d) - d
    d = x0 - x1
    nlog_p1 = jnp.maximum(d, 0.0) + jnp.log(1.0 + jnp.exp(-jnp.abs(d)))
    nlog_p1 = jnp.minimum(nlog_p1, _MAX_NLOG)
    nlog_p0 = jnp.minimum(nlog_p1 - d, _MAX_NLOG)

    bb = x0.shape[0]
    col = lax.broadcasted_iota(jnp.int32, (bb, C), 1)
    is_lab = col == lab_ref[...]                                   # (bb, C) bool

    pos_rows = jnp.sum(jnp.where(is_lab, nlog_p1, 0.0), axis=1, keepdims=True)
    neg_rows = jnp.max(jnp.where(is_lab, 0.0, nlog_p0), axis=1, keepdims=True)

    # Mask rows past the true batch (uneven last block / over-provisioned grid).
    row = lax.broadcasted_iota(jnp.int32, (bb, 1), 0)
    blk = c * pl.num_programs(1) + i
    valid = (blk * bb + row) < n_rows
    partial = jnp.sum(jnp.where(valid, pos_rows + neg_rows, 0.0))

    o_ref[...] += partial   # scalar broadcast into the (1, 8, 128) tile


def _pick_batch_block(B, C, target_bytes=4 << 20):
    """Rows per block sized by bytes (lane-dense 2*C*4 bytes/row), multiple of 8."""
    row_bytes = 2 * C * 4
    bb = max((target_bytes // row_bytes) // 8 * 8, 8)
    return B if bb >= B else bb


def ova_loss(x, labels, block_rows=None):
    """x: (B, 2, C) float logits; labels: (B,) int class indices. Returns scalar f32."""
    B, two, C = x.shape
    assert two == 2, "OVALoss expects input.shape[1] == 2"

    x2d = x.astype(jnp.float32).reshape(B, 2 * C)       # free row-major reshape
    labels2d = labels.astype(jnp.int32).reshape(B, 1)

    bb = _pick_batch_block(B, C) if block_rows is None else block_rows
    assert bb == B or (bb % 8 == 0 and bb <= B), "bad batch block size"

    nblocks = -(-B // bb)                 # cdiv
    P = 2 if nblocks >= 2 else 1          # TODO(synk): query actual core count (>2 TCs)
    S = -(-nblocks // P)                  # inner (accumulation) steps per core
    last = nblocks - 1                    # clamp over-provisioned block indices

    kernel = functools.partial(_ova_loss_kernel, n_rows=B, n_cols=C)

    out = pl.pallas_call(
        kernel,
        out_shape=jax.ShapeDtypeStruct((P, 8, 128), jnp.float32),
        grid_spec=pltpu.PrefetchScalarGridSpec(
            num_scalar_prefetch=0,
            grid=(P, S),
            in_specs=[
                pl.BlockSpec((bb, 2 * C),
                             lambda c, i: (jnp.minimum(c * S + i, last), 0)),
                pl.BlockSpec((bb, 1),
                             lambda c, i: (jnp.minimum(c * S + i, last), 0)),
            ],
            out_specs=pl.BlockSpec((1, 8, 128), lambda c, i: (c, 0, 0)),
        ),
        compiler_params=pltpu.CompilerParams(
            dimension_semantics=("parallel", "arbitrary"),
            vmem_limit_bytes=32 * 1024 * 1024),
    )(x2d, labels2d)

    # one partial per core; scale by 0.5/B once here (not per grid step)
    return 0.5 * jnp.sum(out[:, 0, 0]) / B


# ---------------- pure-JAX reference ----------------
def ref_ova_loss(x, labels):
    p = jax.nn.softmax(x, axis=1)
    _, _, C = x.shape
    label_p = jax.nn.one_hot(labels, C, dtype=jnp.float32)
    label_n = 1.0 - label_p
    pos = jnp.mean(jnp.sum(-jnp.log(p[:, 1, :] + 1e-8) * label_p, axis=1))
    neg = jnp.mean(jnp.max(-jnp.log(p[:, 0, :] + 1e-8) * label_n, axis=1))
    return 0.5 * (pos + neg)


if __name__ == "__main__":
    B, C = 20, 128  # batch, num classes; channel dim fixed to 2 by the module

    key = jax.random.PRNGKey(0)
    kx, kl = jax.random.split(key)
    x = jax.random.normal(kx, (B, 2, C), jnp.float32)
    labels = jax.random.randint(kl, (B,), 0, C, jnp.int32)

    ref = jax.block_until_ready(ref_ova_loss(x, labels))

    # default path: single block, single core
    loss0 = jax.block_until_ready(ova_loss(x, labels))
    # forced small blocks: 3 batch blocks over a 2-way parallel axis with an
    # uneven final block and one masked (over-provisioned) block
    loss1 = jax.block_until_ready(ova_loss(x, labels, block_rows=8))

    for name, v in (("default", loss0), ("blocked", loss1)):
        err = abs(float(v) - float(ref))
        assert err < 1e-4, f"{name} mismatch vs reference: {err} " \
                           f"(kernel={float(v)}, ref={float(ref)})"
    print("KERNEL_OK")
</pallas_src>

<mosaic_0001>
module attributes {stable_mosaic.version = 11 : i64} {
  func.func @_ova_loss_kernel(%arg0: i32, %arg1: i32, %arg2: memref<20x256xf32, #tpu.memory_space<vmem>>, %arg3: memref<20x1xi32, #tpu.memory_space<vmem>>, %arg4: memref<1x8x128xf32, #tpu.memory_space<vmem>>) attributes {dimension_semantics = [#tpu.dimension_semantics<parallel>, #tpu.dimension_semantics<arbitrary>], iteration_bounds = array<i64: 1, 1>, scalar_prefetch = 0 : i64, scratch_operands = 0 : i64, tpu.core_type = #tpu.core_type<tc>, window_params = [{transform_indices = @transform_0, window_bounds = array<i64: 20, 256>}, {transform_indices = @transform_1, window_bounds = array<i64: 20, 1>}, {transform_indices = @transform_2, window_bounds = array<i64: 1, 8, 128>}]} {
    %c0_i32 = arith.constant 0 : i32
    %0 = arith.cmpi eq, %arg1, %c0_i32 : i32
    %1 = arith.extui %0 : i1 to i32
    %c0_i32_0 = arith.constant 0 : i32
    %2 = arith.cmpi ne, %1, %c0_i32_0 : i32
    scf.if %2 {
      %cst_22 = arith.constant 0.000000e+00 : f32
      %52 = vector.broadcast %cst_22 : f32 to vector<1x8x128xf32>
      %c0_23 = arith.constant 0 : index
      %c0_24 = arith.constant 0 : index
      %c0_25 = arith.constant 0 : index
      %53 = vector.load %arg4[%c0_23, %c0_24, %c0_25] : memref<1x8x128xf32, #tpu.memory_space<vmem>>, vector<1x8x128xf32>
      tpu.vector_store %arg4[%c0_23, %c0_24, %c0_25], %52 {strides = array<i32>} : memref<1x8x128xf32, #tpu.memory_space<vmem>>, vector<1x8x128xf32>,
    } else {
    }
    %c0 = arith.constant 0 : index
    %c0_1 = arith.constant 0 : index
    %3 = vector.load %arg2[%c0, %c0_1] : memref<20x256xf32, #tpu.memory_space<vmem>>, vector<20x128xf32>
    %c0_2 = arith.constant 0 : index
    %c128 = arith.constant 128 : index
    %4 = vector.load %arg2[%c0_2, %c128] : memref<20x256xf32, #tpu.memory_space<vmem>>, vector<20x128xf32>
    %5 = arith.subf %3, %4 : vector<20x128xf32>
    %cst = arith.constant 0.000000e+00 : f32
    %6 = vector.broadcast %cst : f32 to vector<20x128xf32>
    %7 = arith.maximumf %5, %6 : vector<20x128xf32>
    %8 = math.absf %5 : vector<20x128xf32>
    %cst_3 = arith.constant 0.000000e+00 : f32
    %9 = vector.broadcast %cst_3 : f32 to vector<20x128xf32>
    %10 = arith.subf %9, %8 : vector<20x128xf32>
    %11 = math.exp %10 : vector<20x128xf32>
    %cst_4 = arith.constant 1.000000e+00 : f32
    %12 = vector.broadcast %cst_4 : f32 to vector<20x128xf32>
    %13 = arith.addf %12, %11 : vector<20x128xf32>
    %14 = math.log %13 : vector<20x128xf32>
    %15 = arith.addf %7, %14 : vector<20x128xf32>
    %cst_5 = arith.constant 18.420681 : f32
    %16 = vector.broadcast %cst_5 : f32 to vector<20x128xf32>
    %17 = arith.minimumf %15, %16 : vector<20x128xf32>
    %18 = arith.subf %17, %5 : vector<20x128xf32>
    %cst_6 = arith.constant 18.420681 : f32
    %19 = vector.broadcast %cst_6 : f32 to vector<20x128xf32>
    %20 = arith.minimumf %18, %19 : vector<20x128xf32>
    %21 = tpu.iota {dimensions = array<i32: 1>} : vector<20x128xi32>
    %c0_7 = arith.constant 0 : index
    %c0_8 = arith.constant 0 : index
    %22 = vector.load %arg3[%c0_7, %c0_8] : memref<20x1xi32, #tpu.memory_space<vmem>>, vector<20x1xi32>
    %23 = vector.broadcast %22 : vector<20x1xi32> to vector<20x128xi32>
    %24 = arith.cmpi eq, %21, %23 : vector<20x128xi32>
    %cst_9 = arith.constant 0.000000e+00 : f32
    %25 = vector.broadcast %cst_9 : f32 to vector<20x128xf32>
    %26 = arith.select %24, %17, %25 : vector<20x128xi1>, vector<20x128xf32>
    %cst_10 = arith.constant dense<0.000000e+00> : vector<20xf32>
    %27 = vector.multi_reduction <add>, %26, %cst_10 [1] : vector<20x128xf32> to vector<20xf32>
    %28 = vector.shape_cast %27 : vector<20xf32> to vector<20x1xf32>
    %cst_11 = arith.constant 0.000000e+00 : f32
    %29 = vector.broadcast %cst_11 : f32 to vector<20x128xf32>
    %30 = arith.select %24, %29, %20 : vector<20x128xi1>, vector<20x128xf32>
    %cst_12 = arith.constant dense<0xFF800000> : vector<20xf32>
    %31 = vector.multi_reduction <maximumf>, %30, %cst_12 [1] : vector<20x128xf32> to vector<20xf32>
    %32 = vector.shape_cast %31 : vector<20xf32> to vector<20x1xf32>
    %33 = tpu.iota {dimensions = array<i32: 0>} : vector<20x1xi32>
    %c1_i32 = arith.constant 1 : i32
    %34 = arith.muli %arg0, %c1_i32 : i32
    %35 = arith.addi %34, %arg1 : i32
    %c20_i32 = arith.constant 20 : i32
    %36 = arith.muli %35, %c20_i32 : i32
    %37 = vector.broadcast %36 : i32 to vector<20x1xi32>
    %38 = arith.addi %37, %33 : vector<20x1xi32>
    %c20_i32_13 = arith.constant 20 : i32
    %39 = vector.broadcast %c20_i32_13 : i32 to vector<20x1xi32>
    %40 = arith.cmpi slt, %38, %39 : vector<20x1xi32>
    %41 = arith.addf %28, %32 : vector<20x1xf32>
    %cst_14 = arith.constant 0.000000e+00 : f32
    %42 = vector.broadcast %cst_14 : f32 to vector<20x1xf32>
    %43 = arith.select %40, %41, %42 : vector<20x1xi1>, vector<20x1xf32>
    %44 = vector.shape_cast %43 : vector<20x1xf32> to vector<1x20x1xf32>
    %cst_15 = arith.constant dense<0.000000e+00> : vector<1xf32>
    %45 = vector.multi_reduction <add>, %44, %cst_15 [1, 2] : vector<1x20x1xf32> to vector<1xf32>
    %46 = vector.shape_cast %45 : vector<1xf32> to vector<1x1x1xf32>
    %47 = vector.extract %46[0, 0, 0] : f32 from vector<1x1x1xf32>
    %c0_16 = arith.constant 0 : index
    %c0_17 = arith.constant 0 : index
    %c0_18 = arith.constant 0 : index
    %48 = vector.load %arg4[%c0_16, %c0_17, %c0_18] : memref<1x8x128xf32, #tpu.memory_space<vmem>>, vector<1x8x128xf32>
    %49 = vector.broadcast %47 : f32 to vector<1x8x128xf32>
    %50 = arith.addf %48, %49 : vector<1x8x128xf32>
    %c0_19 = arith.constant 0 : index
    %c0_20 = arith.constant 0 : index
    %c0_21 = arith.constant 0 : index
    %51 = vector.load %arg4[%c0_19, %c0_20, %c0_21] : memref<1x8x128xf32, #tpu.memory_space<vmem>>, vector<1x8x128xf32>
    tpu.vector_store %arg4[%c0_19, %c0_20, %c0_21], %50 {strides = array<i32>} : memref<1x8x128xf32, #tpu.memory_space<vmem>>, vector<1x8x128xf32>,
    return
  }
  func.func @transform_0(%arg0: i32, %arg1: i32) -> (i32, i32) {
    %c1_i32 = arith.constant 1 : i32
    %0 = arith.muli %arg0, %c1_i32 : i32
    %1 = arith.addi %0, %arg1 : i32
    %c0_i32 = arith.constant 0 : i32
    %2 = arith.minsi %1, %c0_i32 : i32
    %c0_i32_0 = arith.constant 0 : i32
    %c0_i32_1 = arith.constant 0 : i32
    return %2, %c0_i32_0 : i32, i32
  }
  func.func @transform_1(%arg0: i32, %arg1: i32) -> (i32, i32) {
    %c1_i32 = arith.constant 1 : i32
    %0 = arith.muli %arg0, %c1_i32 : i32
    %1 = arith.addi %0, %arg1 : i32
    %c0_i32 = arith.constant 0 : i32
    %2 = arith.minsi %1, %c0_i32 : i32
    %c0_i32_0 = arith.constant 0 : i32
    %c0_i32_1 = arith.constant 0 : i32
    return %2, %c0_i32_0 : i32, i32
  }
  func.func @transform_2(%arg0: i32, %arg1: i32) -> (i32, i32, i32) {
    %c0_i32 = arith.constant 0 : i32
    %c0_i32_0 = arith.constant 0 : i32
    %c0_i32_1 = arith.constant 0 : i32
    return %arg0, %c0_i32, %c0_i32_0 : i32, i32, i32
  }
}

</mosaic_0001>

<llo_original>
// kernel: tpu_custom_call.1
$region0: #{tpu_custom_call.1}
  #allocation0 [shape = 'u32[]', space=smem, size = 0x4, offset = 0x4, fixed_abs, tag = 'smem constant byte address 0x4 - core index']
  #allocation1 [shape = 'u32[144,128]{1,0:T(1,128)}', space=vmem, size = 0x12000, scoped, tag = 'internal scratch']
  %s0 = inlined_call_operand.hbm [shape: f32[20,256], index: 0, kind: input, shape index: {}]
  %s1 = inlined_call_operand.vmem [shape: s32[20,1], index: 1, kind: input, shape index: {}]
  %s2 = inlined_call_operand.hbm [shape: f32[1,8,128], index: 2, kind: output, shape index: {}]
  %s3 = sld [smem:[#allocation0]]
  $region26: #{tpu_custom_call.1} parent=0
    _
  %s5 = ssub.s32 1, %s3
  %s6 = scalar_select 0, %s5, %s3
  $region1: #{tpu_custom_call.1} parent=0
    #allocation2 [shape = 'u8[24576]{0}', space=vmem, size = 0x6000, scoped, tag = 'input window, operand 0, single buffered']
    #allocation3 [shape = 's32[1]{0}', space=sflag, size = 0x4, scoped, tag = 'scoped memory for tpu_custom_call.1']
    #allocation4 [shape = 's32[1]{0}', space=sflag, size = 0x4, scoped, tag = 'scoped memory for tpu_custom_call.1']
    #allocation5 [shape = 'u8[4096]{0}', space=vmem, size = 0x1000, scoped, tag = 'output window, operand 0, single buffered']
    %7 = vsyncpa [#allocation3], 0
    %8 = vsyncpa [#allocation4], 0
    // Predicated region
    $region2: #{tpu_custom_call.1} parent=1 // pred_check
      _
    $region3: #{tpu_custom_call.1} parent=1 // pred_check_branch
      %10 = sbr.rel (0) target = $region5
    $region4: #{tpu_custom_call.1} parent=1 // pred_region
      %s11 = sadd.s32 0, 0
      %p12 = scmp.lt.s32.totalorder %s11, 0
      %s13 = scalar_select %p12, %s11, 0
      %s14 = smul.u32 3, %s13
      %s16 = ssub.s32 768, 768
      %17 = vsyncadd [#allocation3], %s16
      %s18 = smul.addr %s14, 2
      %s19 = smul.addr %s18, 128
      %s20 = scalar_lea.hbm %s0, %s19
      %s21 = sshll.u32 [#allocation2], 4
      %s22 = int_to_ptr.vmem [resolvable:$true] %s21
      %27 = dma.hbm_to_vmem [thread:$0]  %s20, 768, %s22, [#allocation3], 256, 256, 16
    $region5: #{tpu_custom_call.1} parent=1 // pred_fallthru
      _
    // Predicated region
    $region6: #{tpu_custom_call.1} parent=1 // pred_check
      _
    $region7: #{tpu_custom_call.1} parent=1 // pred_check_branch
      %29 = sbr.rel (0) target = $region9
    $region8: #{tpu_custom_call.1} parent=1 // pred_region
      %s30 = sadd.s32 0, 0
      %p31 = scmp.lt.s32.totalorder %s30, 0
      %s32 = scalar_select %p31, %s30, 0
      %s33 = smul.u32 3, %s32
      %p34 = scmp.lt.s32.totalorder %s33, 2
      %s35 = scalar_select %p34, %s33, 2
      %s36 = smul.addr %s35, 8
      %s37 = scalar_lea.vmem %s1, %s36
      %s38 = sadd.s32 0, 0
      %p39 = scmp.lt.s32.totalorder %s38, 0
      %s40 = scalar_select %p39, %s38, 0
      %s41 = smul.u32 3, %s40
    $region9: #{tpu_custom_call.1} parent=1 // pred_fallthru
      _
    // Predicated region
    $region10: #{tpu_custom_call.1} parent=1 // pred_check
      _
    $region11: #{tpu_custom_call.1} parent=1 // pred_check_branch
      %43 = sbr.rel (0) target = $region13
    $region12: #{tpu_custom_call.1} parent=1 // pred_region
      %44 = dma.done [#allocation3], 768
    $region13: #{tpu_custom_call.1} parent=1 // pred_fallthru
      _
    %s45 = sadd.s32 0, 0
    %p46 = scmp.lt.s32.totalorder %s45, 0
    %s47 = scalar_select %p46, %s45, 0
    %s48 = smul.u32 3, %s47
    %p49 = scmp.lt.s32.totalorder %s48, 2
    %s50 = scalar_select %p49, %s48, 2
    %s51 = smul.addr %s50, 8
    %s52 = scalar_lea.vmem %s1, %s51
    %s53 = sadd.s32 0, 0
    %p54 = scmp.lt.s32.totalorder %s53, 0
    %s55 = scalar_select %p54, %s53, 0
    %s56 = smul.u32 3, %s55
    %s57 = sadd.s32 0, 0
    %p58 = scmp.lt.s32.totalorder %s57, 0
    %s59 = scalar_select %p58, %s57, 0
    %s60 = smul.u32 3, %s59
    %p61 = scmp.lt.s32.totalorder %s60, 2
    %s62 = scalar_select %p61, %s60, 2
    %s63 = smul.addr %s62, 8
    %s64 = scalar_lea.vmem %s1, %s63
    %s65 = sadd.s32 0, 0
    %p66 = scmp.lt.s32.totalorder %s65, 0
    %s67 = scalar_select %p66, %s65, 0
    %s68 = smul.u32 3, %s67
    %p69 = scmp.eq.s32.totalorder 0, 0
    // Predicated region
    $region14: #{tpu_custom_call.1} parent=1 // pred_check
      %p70 = pneg %p69
    $region15: #{tpu_custom_call.1} parent=1 // pred_check_branch
      %72 = sbr.rel (%p70) target = $region17
    $region16: #{tpu_custom_call.1} parent=1 // pred_region
      %73 = vst [vmem:[#allocation5] sm:$0xff] 0.0
    $region17: #{tpu_custom_call.1} parent=1 // pred_fallthru
      _
    %v74 = vld [vmem:[#allocation2] sm:$0xff]
    %v75 = vld [vmem:[#allocation2 + $0x10] sm:$0xff]
    %v76 = vld [vmem:[#allocation2 + $0x20] sm:$0xf]
    %v77 = vld [vmem:[#allocation2 + $0x8] sm:$0xff]
    %v78 = vld [vmem:[#allocation2 + $0x18] sm:$0xff]
    %v79 = vld [vmem:[#allocation2 + $0x28] sm:$0xf]
    %v80 = vsub.f32 %v74, %v77
    %v81 = vsub.f32 %v75, %v78
    %v82 = vsub.f32 %v76, %v79
    %v83 = vmax.f32 %v80, 0.0
    %v84 = vmax.f32 %v81, 0.0
    %v85 = vmax.f32 %v82, 0.0
    %v86 = vand.u32 2147483647, %v80
    %v87 = vand.u32 2147483647, %v81
    %v88 = vand.u32 2147483647, %v82
    %v89 = vsub.f32 0.0, %v86
    %v90 = vsub.f32 0.0, %v87
    %v91 = vsub.f32 0.0, %v88
    %v92 = vmul.f32 %v89, 1.442695
    %v93 = vpow.pop %v92
    %v94 = vmul.f32 %v90, 1.442695
    %v95 = vpow.pop %v94
    %v96 = vmul.f32 %v91, 1.442695
    %v97 = vpow.pop %v96
    %v98 = vadd.f32 %v93, 1.0
    %v99 = vadd.f32 %v95, 1.0
    %v100 = vadd.f32 %v97, 1.0
    %v101 = vlog2.pop %v98
    %v102 = vmul.f32 %v101, 0.6931472
    %v103 = vlog2.pop %v99
    %v104 = vmul.f32 %v103, 0.6931472
    %v105 = vlog2.pop %v100
    %v106 = vmul.f32 %v105, 0.6931472
    %v107 = vadd.f32 %v83, %v102
    %v108 = vadd.f32 %v84, %v104
    %v109 = vadd.f32 %v85, %v106
    %v110 = vmin.f32 %v107, 18.420681
    %v111 = vmin.f32 %v108, 18.420681
    %v112 = vmin.f32 %v109, 18.420681
    %v113 = vsub.f32 %v110, %v80
    %v114 = vsub.f32 %v111, %v81
    %v115 = vsub.f32 %v112, %v82
    %v116 = vmin.f32 %v113, 18.420681
    %v117 = vmin.f32 %v114, 18.420681
    %v118 = vmin.f32 %v115, 18.420681
    %v119 = vlaneseq
    %v120 = vand.u32 %v119, 127
    %v121 = vld [vmem:[%s64] sm:$0xff]
    %v122 = vld [vmem:[%s64 + $0x8] sm:$0xff]
    %v123 = vld [vmem:[%s64 + $0x10] sm:$0xf]
    %124 = vset.pattern.permute.xlu0 0
    %125 = vperm.xlu0 %124, %v121
    %v126 = vpop.permute.xlu0 %125
    %127 = vset.pattern.permute.xlu0 0
    %128 = vperm.xlu0 %127, %v122
    %v129 = vpop.permute.xlu0 %128
    %130 = vset.pattern.permute.xlu0 0
    %131 = vperm.xlu0 %130, %v123
    %v132 = vpop.permute.xlu0 %131
    %vm133 = vcmp.eq.s32.totalorder %v120, %v126
    %vm134 = vcmp.eq.s32.totalorder %v120, %v129
    %vm135 = vcmp.eq.s32.totalorder %v120, %v132
    %v136 = vsel %vm133, %v110, 0.0
    %v137 = vsel %vm134, %v111, 0.0
    %v138 = vsel %vm135, %v112, 0.0
    %139 = vadd.xlane.f32.xlu0 %v136
    %v140 = vpop.xlane.xlu0 %139
    %141 = vadd.xlane.f32.xlu0 %v137
    %v142 = vpop.xlane.xlu0 %141
    %vm143 = vcmask 1043456
    %v144 = vsel %vm143, %v138, 0.0
    %145 = vadd.xlane.f32.xlu0 %v144
    %v146 = vpop.xlane.xlu0 %145
    %v147 = vsel %vm133, 0.0, %v116
    %v148 = vsel %vm134, 0.0, %v117
    %v149 = vsel %vm135, 0.0, %v118
    %150 = vmax.xlane.f32.xlu0 %v147
    %v151 = vpop.xlane.xlu0 %150
    %152 = vmax.xlane.f32.xlu0 %v148
    %v153 = vpop.xlane.xlu0 %152
    %v154 = vsel %vm143, %v149, -inf
    %155 = vmax.xlane.f32.xlu0 %v154
    %v156 = vpop.xlane.xlu0 %155
    %v157 = vlaneseq
    %v158 = vshrl.u32 %v157, 7
    %v159 = vadd.s32 %v158, 8
    %v160 = vadd.s32 %v158, 16
    %s161 = sadd.s32 0, 0
    %s162 = smul.u32 %s161, 20
    %v163 = vstv %s162
    %v164 = vadd.s32 %v163, %v158
    %v165 = vadd.s32 %v163, %v159
    %v166 = vadd.s32 %v163, %v160
    %vm167 = vcmp.lt.s32.totalorder %v164, 20
    %vm168 = vcmp.lt.s32.totalorder %v165, 20
    %vm169 = vcmp.lt.s32.totalorder %v166, 20
    %v170 = vadd.f32 %v140, %v151
    %v171 = vadd.f32 %v142, %v153
    %v172 = vadd.f32 %v146, %v156
    %v173 = vsel %vm167, %v170, 0.0
    %v174 = vsel %vm168, %v171, 0.0
    %v175 = vsel %vm169, %v172, 0.0
    %vm176 = vcmask 7168
    %v177 = vsel %vm176, %v173, 0.0
    %v178 = vsel %vm176, %v174, 0.0
    %v179 = vadd.f32 %v177, %v178
    %vm180 = vcmask 3072
    %v181 = vsel %vm180, %v175, 0.0
    %v182 = vadd.f32 %v179, %v181
    %183 = vadd.xlane.f32.xlu0 %v182
    %v184 = vpop.xlane.xlu0 %183
    %v185 = vrot.slane %v184, 4
    %v186 = vadd.f32 %v184, %v185
    %v187 = vrot.slane %v186, 2
    %v188 = vadd.f32 %v186, %v187
    %v189 = vrot.slane %v188, 1
    %v190 = vadd.f32 %v188, %v189
    %s191 = vtos %v190
    %v192 = vld [vmem:[#allocation5] sm:$0xff]
    %v193 = vstv %s191
    %v194 = vadd.f32 %v192, %v193
    %195 = vst [vmem:[#allocation5] sm:$0xff] %v194
    // Predicated region
    $region18: #{tpu_custom_call.1} parent=1 // pred_check
      _
    $region19: #{tpu_custom_call.1} parent=1 // pred_check_branch
      %197 = sbr.rel (0) target = $region21
    $region20: #{tpu_custom_call.1} parent=1 // pred_region
      %s199 = ssub.s32 128, 128
      %200 = vsyncadd [#allocation4], %s199
      %s202 = sshll.u32 [#allocation5], 4
      %s203 = int_to_ptr.vmem [resolvable:$true] %s202
      %205 = dma.vmem_to_hbm [thread:$0]  %s203, 128, %s2, [#allocation4]
    $region21: #{tpu_custom_call.1} parent=1 // pred_fallthru
      _
    // Predicated region
    $region22: #{tpu_custom_call.1} parent=1 // pred_check
      _
    $region23: #{tpu_custom_call.1} parent=1 // pred_check_branch
      %207 = sbr.rel (0) target = $region25
    $region24: #{tpu_custom_call.1} parent=1 // pred_region
      %208 = dma.done [#allocation4], 128
    $region25: #{tpu_custom_call.1} parent=1 // pred_fallthru
      _
    %209 = vsyncpa [#allocation3], 1
    %210 = vsyncpa [#allocation4], 1

</llo_original>
